<compile_context>
chip_gen: v6e
topology: v6e:2x2x1
jax: 0.10.0
libtpu: 0.0.40
codegen_flags: <defaults>
</compile_context>

<pallas_src>
import random
import functools

import jax
import jax.numpy as jnp
from jax.experimental import pallas as pl
from jax.experimental.pallas import tpu as pltpu

MAX_MIDDLE = 3        # PyTorch: random.randint(0, 3) -> 0..3 repetitions
LANE = 128            # TPU vreg lane width
SUBLANE_BF16 = 16     # bf16 packs 16 sublanes per vreg


def _round_up(x, m):
    return (x + m - 1) // m * m


def dynamicnet_kernel(nm_ref, x_ref, w1_ref, b1_ref, w2_ref, b2_ref,
                      w3_ref, b3_ref, o_ref):
    """Fused MLP; middle_linear is applied nm_ref[0] (0..MAX_MIDDLE) times."""
    nm = nm_ref[0]                     # runtime repetition count (SMEM scalar)

    # Hoist all weight / bias loads once (JAX does not CSE repeated reads).
    w1 = w1_ref[...]
    w2 = w2_ref[...]
    w3 = w3_ref[...]
    b1 = b1_ref[...]
    b2 = b2_ref[...]
    b3 = b3_ref[...]

    # input_linear + clamp(min=0): bf16 operands on the MXU, f32 accumulation.
    h = jnp.dot(x_ref[...], w1, preferred_element_type=jnp.float32)
    h = jnp.maximum(h + b1, 0.0)

    # middle_linear reused a runtime-selected number of times.  Statically
    # unrolled over the fixed maximum and gated with a select so a single
    # compiled kernel handles every draw of num_middle.
    for i in range(MAX_MIDDLE):
        h_new = jnp.dot(h.astype(jnp.bfloat16), w2,
                        preferred_element_type=jnp.float32)
        h_new = jnp.maximum(h_new + b2, 0.0)
        h = jnp.where(i < nm, h_new, h)

    # output_linear (no activation); lane-dense unmasked store.
    y = jnp.dot(h.astype(jnp.bfloat16), w3, preferred_element_type=jnp.float32)
    o_ref[...] = (y + b3).astype(o_ref.dtype)


@jax.jit
def dynamicnet_forward(x, w1, b1, w2, b2, w3, b3, num_middle):
    """y = output_linear(relu(middle_linear)^num_middle(relu(input_linear(x)))).

    Weights are stored as (in_features, out_features) so the kernel computes
    x @ W + b (equivalent to PyTorch's x @ W.T with W of shape (out, in)).
    """
    N, D_in = x.shape
    H = w1.shape[1]
    D_out = w3.shape[1]

    # Lane-dense padding of all feature dims; batch padded for bf16 sublanes.
    D_in_p = _round_up(D_in, LANE)
    H_p = _round_up(H, LANE)
    D_out_p = _round_up(D_out, LANE)
    N_p = _round_up(N, SUBLANE_BF16)
    tile_n = min(N_p, 128)
    N_p = _round_up(N_p, tile_n)

    pad2 = lambda a, r, c: jnp.pad(a, ((0, r - a.shape[0]), (0, c - a.shape[1])))

    x_p = pad2(x, N_p, D_in_p).astype(jnp.bfloat16)
    w1_p = pad2(w1, D_in_p, H_p).astype(jnp.bfloat16)
    w2_p = pad2(w2, H_p, H_p).astype(jnp.bfloat16)
    w3_p = pad2(w3, H_p, D_out_p).astype(jnp.bfloat16)
    b1_p = pad2(b1, 1, H_p)            # biases stay f32 (added post-MXU)
    b2_p = pad2(b2, 1, H_p)
    b3_p = pad2(b3, 1, D_out_p)

    nm = jnp.asarray(num_middle, dtype=jnp.int32).reshape((1,))

    grid = (N_p // tile_n,)

    # Weights / biases: constant index_map -> VMEM-resident across grid steps.
    const = lambda shape: pl.BlockSpec(shape, lambda i, nm_ref: (0, 0))

    flops = 2 * N_p * (D_in_p * H_p + MAX_MIDDLE * H_p * H_p + H_p * D_out_p)
    bytes_accessed = sum(int(a.size) * a.dtype.itemsize for a in
                         (x_p, w1_p, w2_p, w3_p, b1_p, b2_p, b3_p)) \
        + N_p * D_out_p * 4

    out_p = pl.pallas_call(
        dynamicnet_kernel,
        out_shape=jax.ShapeDtypeStruct((N_p, D_out_p), jnp.float32),
        grid_spec=pltpu.PrefetchScalarGridSpec(
            num_scalar_prefetch=1,
            grid=grid,
            in_specs=[
                pl.BlockSpec((tile_n, D_in_p), lambda i, nm_ref: (i, 0)),
                const((D_in_p, H_p)),
                const((1, H_p)),
                const((H_p, H_p)),
                const((1, H_p)),
                const((H_p, D_out_p)),
                const((1, D_out_p)),
            ],
            out_specs=pl.BlockSpec((tile_n, D_out_p), lambda i, nm_ref: (i, 0)),
        ),
        compiler_params=pltpu.CompilerParams(
            dimension_semantics=("parallel",)),
        cost_estimate=pl.CostEstimate(
            flops=flops, transcendentals=0, bytes_accessed=bytes_accessed),
    )(nm, x_p, w1_p, b1_p, w2_p, b2_p, w3_p, b3_p)

    return out_p[:N, :D_out]


def reference_forward(x, w1, b1, w2, b2, w3, b3, num_middle):
    """Pure-JAX reference emulating the kernel's bf16-operand / f32-acc math."""
    bf = lambda a: a.astype(jnp.bfloat16)
    h = jnp.dot(bf(x), bf(w1), preferred_element_type=jnp.float32)
    h = jnp.maximum(h + b1, 0.0)
    for _ in range(num_middle):
        h = jnp.dot(bf(h), bf(w2), preferred_element_type=jnp.float32)
        h = jnp.maximum(h + b2, 0.0)
    return jnp.dot(bf(h), bf(w3), preferred_element_type=jnp.float32) + b3


if __name__ == "__main__":
    # Small shapes implied by the module: x is (N, D_in), hidden H, out D_out.
    N, D_in, H, D_out = 8, 16, 32, 8

    key = jax.random.PRNGKey(0)
    kx, k1, k2, k3, k4, k5, k6 = jax.random.split(key, 7)

    x = jax.random.normal(kx, (N, D_in), dtype=jnp.float32)
    w1 = jax.random.normal(k1, (D_in, H), dtype=jnp.float32) * 0.1
    b1 = jax.random.normal(k2, (1, H), dtype=jnp.float32) * 0.1
    w2 = jax.random.normal(k3, (H, H), dtype=jnp.float32) * 0.1
    b2 = jax.random.normal(k4, (1, H), dtype=jnp.float32) * 0.1
    w3 = jax.random.normal(k5, (H, D_out), dtype=jnp.float32) * 0.1
    b3 = jax.random.normal(k6, (1, D_out), dtype=jnp.float32) * 0.1

    # Per-call "dynamic" repetition draw (same host-side draw PyTorch does),
    # now consumed at runtime by the kernel -> no recompile per draw.
    random.seed(0)
    num_middle = random.randint(0, MAX_MIDDLE)

    y = dynamicnet_forward(x, w1, b1, w2, b2, w3, b3, num_middle)
    y = jax.block_until_ready(y)
    assert y.shape == (N, D_out)
    y_ref = reference_forward(x, w1, b1, w2, b2, w3, b3, num_middle)
    assert jnp.allclose(y, y_ref, atol=1e-3, rtol=1e-3)

    # Every possible draw (0..3) reuses the single compiled kernel.
    for nm in range(MAX_MIDDLE + 1):
        y_nm = jax.block_until_ready(
            dynamicnet_forward(x, w1, b1, w2, b2, w3, b3, nm))
        y_nm_ref = reference_forward(x, w1, b1, w2, b2, w3, b3, nm)
        assert jnp.allclose(y_nm, y_nm_ref, atol=1e-3, rtol=1e-3)

    print("KERNEL_OK")
</pallas_src>

<mosaic_0001>
module attributes {stable_mosaic.version = 11 : i64} {
  func.func @dynamicnet_kernel(%arg0: i32, %arg1: memref<1xi32, #tpu.memory_space<smem>>, %arg2: memref<16x128xbf16, #tpu.memory_space<vmem>>, %arg3: memref<128x128xbf16, #tpu.memory_space<vmem>>, %arg4: memref<1x128xf32, #tpu.memory_space<vmem>>, %arg5: memref<128x128xbf16, #tpu.memory_space<vmem>>, %arg6: memref<1x128xf32, #tpu.memory_space<vmem>>, %arg7: memref<128x128xbf16, #tpu.memory_space<vmem>>, %arg8: memref<1x128xf32, #tpu.memory_space<vmem>>, %arg9: memref<16x128xf32, #tpu.memory_space<vmem>>) attributes {dimension_semantics = [#tpu.dimension_semantics<parallel>], iteration_bounds = array<i64: 1>, scalar_prefetch = 1 : i64, scratch_operands = 0 : i64, tpu.core_type = #tpu.core_type<tc>, window_params = [{transform_indices = @transform_0, window_bounds = array<i64: 16, 128>}, {pipeline_mode = #tpu.pipeline_mode<synchronous>, transform_indices = @transform_1, window_bounds = array<i64: 128, 128>}, {pipeline_mode = #tpu.pipeline_mode<synchronous>, transform_indices = @transform_2, window_bounds = array<i64: 1, 128>}, {pipeline_mode = #tpu.pipeline_mode<synchronous>, transform_indices = @transform_3, window_bounds = array<i64: 128, 128>}, {pipeline_mode = #tpu.pipeline_mode<synchronous>, transform_indices = @transform_4, window_bounds = array<i64: 1, 128>}, {pipeline_mode = #tpu.pipeline_mode<synchronous>, transform_indices = @transform_5, window_bounds = array<i64: 128, 128>}, {pipeline_mode = #tpu.pipeline_mode<synchronous>, transform_indices = @transform_6, window_bounds = array<i64: 1, 128>}, {transform_indices = @transform_7, window_bounds = array<i64: 16, 128>}]} {
    %c0 = arith.constant 0 : index
    %0 = memref.load %arg1[%c0] : memref<1xi32, #tpu.memory_space<smem>>
    %c0_0 = arith.constant 0 : index
    %c0_1 = arith.constant 0 : index
    %1 = vector.load %arg3[%c0_0, %c0_1] : memref<128x128xbf16, #tpu.memory_space<vmem>>, vector<128x128xbf16>
    %c0_2 = arith.constant 0 : index
    %c0_3 = arith.constant 0 : index
    %2 = vector.load %arg5[%c0_2, %c0_3] : memref<128x128xbf16, #tpu.memory_space<vmem>>, vector<128x128xbf16>
    %c0_4 = arith.constant 0 : index
    %c0_5 = arith.constant 0 : index
    %3 = vector.load %arg7[%c0_4, %c0_5] : memref<128x128xbf16, #tpu.memory_space<vmem>>, vector<128x128xbf16>
    %c0_6 = arith.constant 0 : index
    %c0_7 = arith.constant 0 : index
    %4 = vector.load %arg4[%c0_6, %c0_7] : memref<1x128xf32, #tpu.memory_space<vmem>>, vector<1x128xf32>
    %c0_8 = arith.constant 0 : index
    %c0_9 = arith.constant 0 : index
    %5 = vector.load %arg6[%c0_8, %c0_9] : memref<1x128xf32, #tpu.memory_space<vmem>>, vector<1x128xf32>
    %c0_10 = arith.constant 0 : index
    %c0_11 = arith.constant 0 : index
    %6 = vector.load %arg8[%c0_10, %c0_11] : memref<1x128xf32, #tpu.memory_space<vmem>>, vector<1x128xf32>
    %c0_12 = arith.constant 0 : index
    %c0_13 = arith.constant 0 : index
    %7 = vector.load %arg2[%c0_12, %c0_13] : memref<16x128xbf16, #tpu.memory_space<vmem>>, vector<16x128xbf16>
    %cst = arith.constant dense<0.000000e+00> : vector<16x128xf32>
    %8 = tpu.matmul %7, %1, %cst {dimension_numbers = #tpu.dot_dimension_numbers<[1], [0], [0], [1], [0, 0, 1, 1], [], []>} : vector<16x128xbf16>, vector<128x128xbf16>, vector<16x128xf32> -> vector<16x128xf32>
    %9 = vector.broadcast %4 : vector<1x128xf32> to vector<16x128xf32>
    %10 = arith.addf %8, %9 : vector<16x128xf32>
    %cst_14 = arith.constant 0.000000e+00 : f32
    %11 = vector.broadcast %cst_14 : f32 to vector<16x128xf32>
    %12 = arith.maximumf %10, %11 : vector<16x128xf32>
    %13 = arith.truncf %12 : vector<16x128xf32> to vector<16x128xbf16>
    %cst_15 = arith.constant dense<0.000000e+00> : vector<16x128xf32>
    %14 = tpu.matmul %13, %2, %cst_15 {dimension_numbers = #tpu.dot_dimension_numbers<[1], [0], [0], [1], [0, 0, 1, 1], [], []>} : vector<16x128xbf16>, vector<128x128xbf16>, vector<16x128xf32> -> vector<16x128xf32>
    %15 = vector.broadcast %5 : vector<1x128xf32> to vector<16x128xf32>
    %16 = arith.addf %14, %15 : vector<16x128xf32>
    %cst_16 = arith.constant 0.000000e+00 : f32
    %17 = vector.broadcast %cst_16 : f32 to vector<16x128xf32>
    %18 = arith.maximumf %16, %17 : vector<16x128xf32>
    %c0_i32 = arith.constant 0 : i32
    %19 = arith.cmpi sgt, %0, %c0_i32 : i32
    %20 = arith.select %19, %18, %12 : vector<16x128xf32>
    %21 = arith.truncf %20 : vector<16x128xf32> to vector<16x128xbf16>
    %cst_17 = arith.constant dense<0.000000e+00> : vector<16x128xf32>
    %22 = tpu.matmul %21, %2, %cst_17 {dimension_numbers = #tpu.dot_dimension_numbers<[1], [0], [0], [1], [0, 0, 1, 1], [], []>} : vector<16x128xbf16>, vector<128x128xbf16>, vector<16x128xf32> -> vector<16x128xf32>
    %23 = vector.broadcast %5 : vector<1x128xf32> to vector<16x128xf32>
    %24 = arith.addf %22, %23 : vector<16x128xf32>
    %cst_18 = arith.constant 0.000000e+00 : f32
    %25 = vector.broadcast %cst_18 : f32 to vector<16x128xf32>
    %26 = arith.maximumf %24, %25 : vector<16x128xf32>
    %c1_i32 = arith.constant 1 : i32
    %27 = arith.cmpi sgt, %0, %c1_i32 : i32
    %28 = arith.select %27, %26, %20 : vector<16x128xf32>
    %29 = arith.truncf %28 : vector<16x128xf32> to vector<16x128xbf16>
    %cst_19 = arith.constant dense<0.000000e+00> : vector<16x128xf32>
    %30 = tpu.matmul %29, %2, %cst_19 {dimension_numbers = #tpu.dot_dimension_numbers<[1], [0], [0], [1], [0, 0, 1, 1], [], []>} : vector<16x128xbf16>, vector<128x128xbf16>, vector<16x128xf32> -> vector<16x128xf32>
    %31 = vector.broadcast %5 : vector<1x128xf32> to vector<16x128xf32>
    %32 = arith.addf %30, %31 : vector<16x128xf32>
    %cst_20 = arith.constant 0.000000e+00 : f32
    %33 = vector.broadcast %cst_20 : f32 to vector<16x128xf32>
    %34 = arith.maximumf %32, %33 : vector<16x128xf32>
    %c2_i32 = arith.constant 2 : i32
    %35 = arith.cmpi sgt, %0, %c2_i32 : i32
    %36 = arith.select %35, %34, %28 : vector<16x128xf32>
    %37 = arith.truncf %36 : vector<16x128xf32> to vector<16x128xbf16>
    %cst_21 = arith.constant dense<0.000000e+00> : vector<16x128xf32>
    %38 = tpu.matmul %37, %3, %cst_21 {dimension_numbers = #tpu.dot_dimension_numbers<[1], [0], [0], [1], [0, 0, 1, 1], [], []>} : vector<16x128xbf16>, vector<128x128xbf16>, vector<16x128xf32> -> vector<16x128xf32>
    %39 = vector.broadcast %6 : vector<1x128xf32> to vector<16x128xf32>
    %40 = arith.addf %38, %39 : vector<16x128xf32>
    %c0_22 = arith.constant 0 : index
    %c0_23 = arith.constant 0 : index
    %41 = vector.load %arg9[%c0_22, %c0_23] : memref<16x128xf32, #tpu.memory_space<vmem>>, vector<16x128xf32>
    tpu.vector_store %arg9[%c0_22, %c0_23], %40 {strides = array<i32>} : memref<16x128xf32, #tpu.memory_space<vmem>>, vector<16x128xf32>,
    return
  }
  func.func @transform_0(%arg0: i32, %arg1: memref<1xi32, #tpu.memory_space<smem>>) -> (i32, i32) {
    %c0_i32 = arith.constant 0 : i32
    %c0_i32_0 = arith.constant 0 : i32
    return %arg0, %c0_i32 : i32, i32
  }
  func.func @transform_1(%arg0: i32, %arg1: memref<1xi32, #tpu.memory_space<smem>>) -> (i32, i32) {
    %c0_i32 = arith.constant 0 : i32
    %c0_i32_0 = arith.constant 0 : i32
    %c0_i32_1 = arith.constant 0 : i32
    return %c0_i32, %c0_i32_0 : i32, i32
  }
  func.func @transform_2(%arg0: i32, %arg1: memref<1xi32, #tpu.memory_space<smem>>) -> (i32, i32) {
    %c0_i32 = arith.constant 0 : i32
    %c0_i32_0 = arith.constant 0 : i32
    %c0_i32_1 = arith.constant 0 : i32
    return %c0_i32, %c0_i32_0 : i32, i32
  }
  func.func @transform_3(%arg0: i32, %arg1: memref<1xi32, #tpu.memory_space<smem>>) -> (i32, i32) {
    %c0_i32 = arith.constant 0 : i32
    %c0_i32_0 = arith.constant 0 : i32
    %c0_i32_1 = arith.constant 0 : i32
    return %c0_i32, %c0_i32_0 : i32, i32
  }
  func.func @transform_4(%arg0: i32, %arg1: memref<1xi32, #tpu.memory_space<smem>>) -> (i32, i32) {
    %c0_i32 = arith.constant 0 : i32
    %c0_i32_0 = arith.constant 0 : i32
    %c0_i32_1 = arith.constant 0 : i32
    return %c0_i32, %c0_i32_0 : i32, i32
  }
  func.func @transform_5(%arg0: i32, %arg1: memref<1xi32, #tpu.memory_space<smem>>) -> (i32, i32) {
    %c0_i32 = arith.constant 0 : i32
    %c0_i32_0 = arith.constant 0 : i32
    %c0_i32_1 = arith.constant 0 : i32
    return %c0_i32, %c0_i32_0 : i32, i32
  }
  func.func @transform_6(%arg0: i32, %arg1: memref<1xi32, #tpu.memory_space<smem>>) -> (i32, i32) {
    %c0_i32 = arith.constant 0 : i32
    %c0_i32_0 = arith.constant 0 : i32
    %c0_i32_1 = arith.constant 0 : i32
    return %c0_i32, %c0_i32_0 : i32, i32
  }
  func.func @transform_7(%arg0: i32, %arg1: memref<1xi32, #tpu.memory_space<smem>>) -> (i32, i32) {
    %c0_i32 = arith.constant 0 : i32
    %c0_i32_0 = arith.constant 0 : i32
    return %arg0, %c0_i32 : i32, i32
  }
}

</mosaic_0001>

<llo_original>
// kernel: dynamicnet_forward.1
$region0: #{dynamicnet_forward.1}
  #allocation0 [shape = 'u32[]', space=smem, size = 0x4, offset = 0x4, fixed_abs, tag = 'smem constant byte address 0x4 - core index']
  #allocation1 [shape = 'u32[144,128]{1,0:T(1,128)}', space=vmem, size = 0x12000, scoped, tag = 'internal scratch']
  #allocation2 [shape = 's32[1]{0}', space=sflag, size = 0x4, scoped, tag = 'scoped memory for dynamicnet_forward.1']
  #allocation3 [shape = 's32[1]{0:T(128)S(6)}', space=smem, size = 0x200, scoped, tag = 'prefetched SMEM operand 0']
  %s0 = inlined_call_operand.<no memory space> [shape: s32[1], index: 0, kind: input, shape index: {}]
  %s1 = inlined_call_operand.vmem [shape: bf16[16,128], index: 1, kind: input, shape index: {}]
  %s2 = inlined_call_operand.vmem [shape: bf16[128,128], index: 2, kind: input, shape index: {}]
  %s3 = inlined_call_operand.vmem [shape: f32[1,128], index: 3, kind: input, shape index: {}]
  %s4 = inlined_call_operand.vmem [shape: bf16[128,128], index: 4, kind: input, shape index: {}]
  %s5 = inlined_call_operand.vmem [shape: f32[1,128], index: 5, kind: input, shape index: {}]
  %s6 = inlined_call_operand.vmem [shape: bf16[128,128], index: 6, kind: input, shape index: {}]
  %s7 = inlined_call_operand.vmem [shape: f32[1,128], index: 7, kind: input, shape index: {}]
  %s8 = inlined_call_operand.vmem [shape: f32[16,128], index: 8, kind: output, shape index: {}]
  %s9 = sld [smem:[#allocation0]]
  $region38: #{dynamicnet_forward.1} parent=0
    _
  %s11 = ssub.s32 1, %s9
  %s12 = scalar_select 0, %s11, %s9
  %13 = sst [smem:[#allocation3]] %s0
  // Predicated region
  $region2: #{dynamicnet_forward.1} parent=0 // pred_check
    _
  $region3: #{dynamicnet_forward.1} parent=0 // pred_check_branch
    %15 = sbr.rel (0) target = $region5
  $region4: #{dynamicnet_forward.1} parent=0 // pred_region
    _
  $region5: #{dynamicnet_forward.1} parent=0 // pred_fallthru
    _
  // Predicated region
  $region6: #{dynamicnet_forward.1} parent=0 // pred_check
    _
  $region7: #{dynamicnet_forward.1} parent=0 // pred_check_branch
    %17 = sbr.rel (0) target = $region9
  $region8: #{dynamicnet_forward.1} parent=0 // pred_region
    _
  $region9: #{dynamicnet_forward.1} parent=0 // pred_fallthru
    _
  // Predicated region
  $region10: #{dynamicnet_forward.1} parent=0 // pred_check
    _
  $region11: #{dynamicnet_forward.1} parent=0 // pred_check_branch
    %19 = sbr.rel (0) target = $region13
  $region12: #{dynamicnet_forward.1} parent=0 // pred_region
    _
  $region13: #{dynamicnet_forward.1} parent=0 // pred_fallthru
    _
  // Predicated region
  $region14: #{dynamicnet_forward.1} parent=0 // pred_check
    _
  $region15: #{dynamicnet_forward.1} parent=0 // pred_check_branch
    %21 = sbr.rel (0) target = $region17
  $region16: #{dynamicnet_forward.1} parent=0 // pred_region
    _
  $region17: #{dynamicnet_forward.1} parent=0 // pred_fallthru
    _
  // Predicated region
  $region18: #{dynamicnet_forward.1} parent=0 // pred_check
    _
  $region19: #{dynamicnet_forward.1} parent=0 // pred_check_branch
    %23 = sbr.rel (0) target = $region21
  $region20: #{dynamicnet_forward.1} parent=0 // pred_region
    _
  $region21: #{dynamicnet_forward.1} parent=0 // pred_fallthru
    _
  // Predicated region
  $region22: #{dynamicnet_forward.1} parent=0 // pred_check
    _
  $region23: #{dynamicnet_forward.1} parent=0 // pred_check_branch
    %25 = sbr.rel (0) target = $region25
  $region24: #{dynamicnet_forward.1} parent=0 // pred_region
    _
  $region25: #{dynamicnet_forward.1} parent=0 // pred_fallthru
    _
  // Predicated region
  $region26: #{dynamicnet_forward.1} parent=0 // pred_check
    _
  $region27: #{dynamicnet_forward.1} parent=0 // pred_check_branch
    %27 = sbr.rel (0) target = $region29
  $region28: #{dynamicnet_forward.1} parent=0 // pred_region
    _
  $region29: #{dynamicnet_forward.1} parent=0 // pred_fallthru
    _
  %s29 = sld [smem:[#allocation3]]
  %v30 = vld [vmem:[%s2] sm:$0xf]
  %v31 = vld [vmem:[%s2 + $0x4] sm:$0xf]
  %v32 = vld [vmem:[%s2 + $0x8] sm:$0xf]
  %v33 = vld [vmem:[%s2 + $0xc] sm:$0xf]
  %v34 = vld [vmem:[%s2 + $0x10] sm:$0xf]
  %v35 = vld [vmem:[%s2 + $0x14] sm:$0xf]
  %v36 = vld [vmem:[%s2 + $0x18] sm:$0xf]
  %v37 = vld [vmem:[%s2 + $0x1c] sm:$0xf]
  %v38 = vld [vmem:[%s2 + $0x20] sm:$0xf]
  %v39 = vld [vmem:[%s2 + $0x24] sm:$0xf]
  %v40 = vld [vmem:[%s2 + $0x28] sm:$0xf]
  %v41 = vld [vmem:[%s2 + $0x2c] sm:$0xf]
  %v42 = vld [vmem:[%s2 + $0x30] sm:$0xf]
  %v43 = vld [vmem:[%s2 + $0x34] sm:$0xf]
  %v44 = vld [vmem:[%s2 + $0x38] sm:$0xf]
  %v45 = vld [vmem:[%s2 + $0x3c] sm:$0xf]
  %v46 = vld [vmem:[%s4] sm:$0xf]
  %v47 = vld [vmem:[%s4 + $0x4] sm:$0xf]
  %v48 = vld [vmem:[%s4 + $0x8] sm:$0xf]
  %v49 = vld [vmem:[%s4 + $0xc] sm:$0xf]
  %v50 = vld [vmem:[%s4 + $0x10] sm:$0xf]
  %v51 = vld [vmem:[%s4 + $0x14] sm:$0xf]
  %v52 = vld [vmem:[%s4 + $0x18] sm:$0xf]
  %v53 = vld [vmem:[%s4 + $0x1c] sm:$0xf]
  %v54 = vld [vmem:[%s4 + $0x20] sm:$0xf]
  %v55 = vld [vmem:[%s4 + $0x24] sm:$0xf]
  %v56 = vld [vmem:[%s4 + $0x28] sm:$0xf]
  %v57 = vld [vmem:[%s4 + $0x2c] sm:$0xf]
  %v58 = vld [vmem:[%s4 + $0x30] sm:$0xf]
  %v59 = vld [vmem:[%s4 + $0x34] sm:$0xf]
  %v60 = vld [vmem:[%s4 + $0x38] sm:$0xf]
  %v61 = vld [vmem:[%s4 + $0x3c] sm:$0xf]
  %v62 = vld [vmem:[%s6] sm:$0xf]
  %v63 = vld [vmem:[%s6 + $0x4] sm:$0xf]
  %v64 = vld [vmem:[%s6 + $0x8] sm:$0xf]
  %v65 = vld [vmem:[%s6 + $0xc] sm:$0xf]
  %v66 = vld [vmem:[%s6 + $0x10] sm:$0xf]
  %v67 = vld [vmem:[%s6 + $0x14] sm:$0xf]
  %v68 = vld [vmem:[%s6 + $0x18] sm:$0xf]
  %v69 = vld [vmem:[%s6 + $0x1c] sm:$0xf]
  %v70 = vld [vmem:[%s6 + $0x20] sm:$0xf]
  %v71 = vld [vmem:[%s6 + $0x24] sm:$0xf]
  %v72 = vld [vmem:[%s6 + $0x28] sm:$0xf]
  %v73 = vld [vmem:[%s6 + $0x2c] sm:$0xf]
  %v74 = vld [vmem:[%s6 + $0x30] sm:$0xf]
  %v75 = vld [vmem:[%s6 + $0x34] sm:$0xf]
  %v76 = vld [vmem:[%s6 + $0x38] sm:$0xf]
  %v77 = vld [vmem:[%s6 + $0x3c] sm:$0xf]
  %v78 = vld [vmem:[%s3] sm:$0x1]
  %v79 = vld [vmem:[%s5] sm:$0x1]
  %v80 = vld [vmem:[%s7] sm:$0x1]
  %v81 = vld [vmem:[%s1] sm:$0xf]
  %v82 = vld [vmem:[%s1 + $0x4] sm:$0xf]
  %v84 = vlaneseq
  %v85 = vshrl.u32 %v84, 7
  %v86 = vsub.s32 0, %v85
  %v87 = vrot.slane %v78, %v86
  %v91 = vunpack.c.l.b16 %v81
  %v92 = vunpack.c.l.b16 %v82
  %v93 = vpack.c.b16 %v92, %v91
  %v111 = vunpack.c.l.b16 %v30
  %v112 = vunpack.c.l.b16 %v31
  %v113 = vunpack.c.l.b16 %v32
  %v114 = vunpack.c.l.b16 %v33
  %v115 = vunpack.c.l.b16 %v34
  %v116 = vunpack.c.l.b16 %v35
  %v117 = vunpack.c.l.b16 %v36
  %v118 = vunpack.c.l.b16 %v37
  %v119 = vunpack.c.l.b16 %v38
  %v120 = vunpack.c.l.b16 %v39
  %v121 = vunpack.c.l.b16 %v40
  %v122 = vunpack.c.l.b16 %v41
  %v123 = vunpack.c.l.b16 %v42
  %v124 = vunpack.c.l.b16 %v43
  %v125 = vunpack.c.l.b16 %v44
  %v126 = vunpack.c.l.b16 %v45
  %v127 = vpack.c.b16 %v112, %v111
  %v128 = vpack.c.b16 %v114, %v113
  %v129 = vpack.c.b16 %v116, %v115
  %v130 = vpack.c.b16 %v118, %v117
  %v131 = vpack.c.b16 %v120, %v119
  %v132 = vpack.c.b16 %v122, %v121
  %v133 = vpack.c.b16 %v124, %v123
  %v134 = vpack.c.b16 %v126, %v125
  %143 = vmatprep.subr.bf16.mxu0 0
  %144 = vmatpush1.bf16.msra.mxu0 %v134
  %145 = vmatprep.subr.bf16.mxu0 0
  %146 = vmatpush1.bf16.msra.mxu0 %v133
  %147 = vmatprep.subr.bf16.mxu0 0
  %148 = vmatpush1.bf16.msra.mxu0 %v132
  %149 = vmatprep.subr.bf16.mxu0 0
  %150 = vmatpush1.bf16.msra.mxu0 %v131
  %151 = vmatprep.subr.bf16.mxu0 0
  %152 = vmatpush1.bf16.msra.mxu0 %v130
  %153 = vmatprep.subr.bf16.mxu0 0
  %154 = vmatpush1.bf16.msra.mxu0 %v129
  %155 = vmatprep.subr.bf16.mxu0 0
  %156 = vmatpush1.bf16.msra.mxu0 %v128
  %157 = vmatprep.subr.bf16.mxu0 0
  %158 = vmatpush1.bf16.msra.mxu0 %v127
  %159 = vmatprep.subr.bf16.mxu0 0
  %160 = vmatpush2.bf16.msra.mxu0 0
  %161 = vmatprep.subr.bf16.mxu0 0
  %162 = vmatpush2.bf16.msra.mxu0 0
  %163 = vmatprep.subr.bf16.mxu0 0
  %164 = vmatpush2.bf16.msra.mxu0 0
  %165 = vmatprep.subr.bf16.mxu0 0
  %166 = vmatpush2.bf16.msra.mxu0 0
  %167 = vmatprep.subr.bf16.mxu0 0
  %168 = vmatpush2.bf16.msra.mxu0 0
  %169 = vmatprep.subr.bf16.mxu0 0
  %170 = vmatpush2.bf16.msra.mxu0 0
  %171 = vmatprep.subr.bf16.mxu0 0
  %172 = vmatpush2.bf16.msra.mxu0 0
  %173 = vmatprep.subr.bf16.mxu0 0
  %174 = vmatpush2.bf16.msra.mxu0 0
  %175 = vmatprep.mubr.bf16.mxu0 0
  %176 = vmatmul.mubr.bf16.gmra.mxu0 %v93
  %v177 = vpop.f32.mrf.mxu0
  %v178 = vadd.f32 %v87, %v177
  %v179 = vpop.f32.mrf.mxu0
  %v180 = vpop.f32.mrf.mxu0
  %v181 = vadd.f32 %v87, %v180
  %v182 = vpop.f32.mrf.mxu0
  %183 = vdwg.mxu0
  %v184 = vmax.f32 %v178, 0.0
  %v185 = vmax.f32 %v181, 0.0
  %v186 = vpack.c.bf16 %v185, %v184
  %v188 = vlaneseq
  %v189 = vshrl.u32 %v188, 7
  %v190 = vsub.s32 0, %v189
  %v191 = vrot.slane %v79, %v190
  %v209 = vunpack.c.l.b16 %v46
  %v210 = vunpack.c.l.b16 %v47
  %v211 = vunpack.c.l.b16 %v48
  %v212 = vunpack.c.l.b16 %v49
  %v213 = vunpack.c.l.b16 %v50
  %v214 = vunpack.c.l.b16 %v51
  %v215 = vunpack.c.l.b16 %v52
  %v216 = vunpack.c.l.b16 %v53
  %v217 = vunpack.c.l.b16 %v54
  %v218 = vunpack.c.l.b16 %v55
  %v219 = vunpack.c.l.b16 %v56
  %v220 = vunpack.c.l.b16 %v57
  %v221 = vunpack.c.l.b16 %v58
  %v222 = vunpack.c.l.b16 %v59
  %v223 = vunpack.c.l.b16 %v60
  %v224 = vunpack.c.l.b16 %v61
  %v225 = vpack.c.b16 %v210, %v209
  %v226 = vpack.c.b16 %v212, %v211
  %v227 = vpack.c.b16 %v214, %v213
  %v228 = vpack.c.b16 %v216, %v215
  %v229 = vpack.c.b16 %v218, %v217
  %v230 = vpack.c.b16 %v220, %v219
  %v231 = vpack.c.b16 %v222, %v221
  %v232 = vpack.c.b16 %v224, %v223
  %241 = vmatprep.subr.bf16.mxu0 0
  %242 = vmatpush1.bf16.msra.mxu0 %v232
  %243 = vmatprep.subr.bf16.mxu0 0
  %244 = vmatpush1.bf16.msra.mxu0 %v231
  %245 = vmatprep.subr.bf16.mxu0 0
  %246 = vmatpush1.bf16.msra.mxu0 %v230
  %247 = vmatprep.subr.bf16.mxu0 0
  %248 = vmatpush1.bf16.msra.mxu0 %v229
  %249 = vmatprep.subr.bf16.mxu0 0
  %250 = vmatpush1.bf16.msra.mxu0 %v228
  %251 = vmatprep.subr.bf16.mxu0 0
  %252 = vmatpush1.bf16.msra.mxu0 %v227
  %253 = vmatprep.subr.bf16.mxu0 0
  %254 = vmatpush1.bf16.msra.mxu0 %v226
  %255 = vmatprep.subr.bf16.mxu0 0
  %256 = vmatpush1.bf16.msra.mxu0 %v225
  %257 = vmatprep.subr.bf16.mxu0 0
  %258 = vmatpush2.bf16.msra.mxu0 0
  %259 = vmatprep.subr.bf16.mxu0 0
  %260 = vmatpush2.bf16.msra.mxu0 0
  %261 = vmatprep.subr.bf16.mxu0 0
  %262 = vmatpush2.bf16.msra.mxu0 0
  %263 = vmatprep.subr.bf16.mxu0 0
  %264 = vmatpush2.bf16.msra.mxu0 0
  %265 = vmatprep.subr.bf16.mxu0 0
  %266 = vmatpush2.bf16.msra.mxu0 0
  %267 = vmatprep.subr.bf16.mxu0 0
  %268 = vmatpush2.bf16.msra.mxu0 0
  %269 = vmatprep.subr.bf16.mxu0 0
  %270 = vmatpush2.bf16.msra.mxu0 0
  %271 = vmatprep.subr.bf16.mxu0 0
  %272 = vmatpush2.bf16.msra.mxu0 0
  %273 = vmatprep.mubr.bf16.mxu0 0
  %274 = vmatmul.mubr.bf16.gmra.mxu0 %v186
  %v275 = vpop.f32.mrf.mxu0
  %v276 = vadd.f32 %v191, %v275
  %v277 = vpop.f32.mrf.mxu0
  %v278 = vpop.f32.mrf.mxu0
  %v279 = vadd.f32 %v191, %v278
  %v280 = vpop.f32.mrf.mxu0
  %281 = vdwg.mxu0
  %v282 = vmax.f32 %v276, 0.0
  %v283 = vmax.f32 %v279, 0.0
  %p284 = scmp.gt.s32.totalorder %s29, 0
  %s285 = scalar_select %p284, 1, 0
  %v286 = vstv %s285
  %vm287 = vcmp.eq.s32.totalorder %v286, 1
  %v288 = vsel %vm287, %v282, %v184
  %v289 = vsel %vm287, %v283, %v185
  %v290 = vpack.c.bf16 %v289, %v288
  %291 = vmatprep.subr.bf16.mxu0 0
  %292 = vmatpush1.bf16.msra.mxu0 %v232
  %293 = vmatprep.subr.bf16.mxu0 0
  %294 = vmatpush1.bf16.msra.mxu0 %v231
  %295 = vmatprep.subr.bf16.mxu0 0
  %296 = vmatpush1.bf16.msra.mxu0 %v230
  %297 = vmatprep.subr.bf16.mxu0 0
  %298 = vmatpush1.bf16.msra.mxu0 %v229
  %299 = vmatprep.subr.bf16.mxu0 0
  %300 = vmatpush1.bf16.msra.mxu0 %v228
  %301 = vmatprep.subr.bf16.mxu0 0
  %302 = vmatpush1.bf16.msra.mxu0 %v227
  %303 = vmatprep.subr.bf16.mxu0 0
  %304 = vmatpush1.bf16.msra.mxu0 %v226
  %305 = vmatprep.subr.bf16.mxu0 0
  %306 = vmatpush1.bf16.msra.mxu0 %v225
  %307 = vmatprep.subr.bf16.mxu0 0
  %308 = vmatpush2.bf16.msra.mxu0 0
  %309 = vmatprep.subr.bf16.mxu0 0
  %310 = vmatpush2.bf16.msra.mxu0 0
  %311 = vmatprep.subr.bf16.mxu0 0
  %312 = vmatpush2.bf16.msra.mxu0 0
  %313 = vmatprep.subr.bf16.mxu0 0
  %314 = vmatpush2.bf16.msra.mxu0 0
  %315 = vmatprep.subr.bf16.mxu0 0
  %316 = vmatpush2.bf16.msra.mxu0 0
  %317 = vmatprep.subr.bf16.mxu0 0
  %318 = vmatpush2.bf16.msra.mxu0 0
  %319 = vmatprep.subr.bf16.mxu0 0
  %320 = vmatpush2.bf16.msra.mxu0 0
  %321 = vmatprep.subr.bf16.mxu0 0
  %322 = vmatpush2.bf16.msra.mxu0 0
  %323 = vmatprep.mubr.bf16.mxu0 0
  %324 = vmatmul.mubr.bf16.gmra.mxu0 %v290
  %v325 = vpop.f32.mrf.mxu0
  %v326 = vadd.f32 %v191, %v325
  %v327 = vpop.f32.mrf.mxu0
  %v328 = vpop.f32.mrf.mxu0
  %v329 = vadd.f32 %v191, %v328
  %v330 = vpop.f32.mrf.mxu0
  %331 = vdwg.mxu0
  %v332 = vmax.f32 %v326, 0.0
  %v333 = vmax.f32 %v329, 0.0
  %p334 = scmp.gt.s32.totalorder %s29, 1
  %s335 = scalar_select %p334, 1, 0
  %v336 = vstv %s335
  %vm337 = vcmp.eq.s32.totalorder %v336, 1
  %v338 = vsel %vm337, %v332, %v288
  %v339 = vsel %vm337, %v333, %v289
  %v340 = vpack.c.bf16 %v339, %v338
  %341 = vmatprep.subr.bf16.mxu0 0
  %342 = vmatpush1.bf16.msra.mxu0 %v232
  %343 = vmatprep.subr.bf16.mxu0 0
  %344 = vmatpush1.bf16.msra.mxu0 %v231
  %345 = vmatprep.subr.bf16.mxu0 0
  %346 = vmatpush1.bf16.msra.mxu0 %v230
  %347 = vmatprep.subr.bf16.mxu0 0
  %348 = vmatpush1.bf16.msra.mxu0 %v229
  %349 = vmatprep.subr.bf16.mxu0 0
  %350 = vmatpush1.bf16.msra.mxu0 %v228
  %351 = vmatprep.subr.bf16.mxu0 0
  %352 = vmatpush1.bf16.msra.mxu0 %v227
  %353 = vmatprep.subr.bf16.mxu0 0
  %354 = vmatpush1.bf16.msra.mxu0 %v226
  %355 = vmatprep.subr.bf16.mxu0 0
  %356 = vmatpush1.bf16.msra.mxu0 %v225
  %357 = vmatprep.subr.bf16.mxu0 0
  %358 = vmatpush2.bf16.msra.mxu0 0
  %359 = vmatprep.subr.bf16.mxu0 0
  %360 = vmatpush2.bf16.msra.mxu0 0
  %361 = vmatprep.subr.bf16.mxu0 0
  %362 = vmatpush2.bf16.msra.mxu0 0
  %363 = vmatprep.subr.bf16.mxu0 0
  %364 = vmatpush2.bf16.msra.mxu0 0
  %365 = vmatprep.subr.bf16.mxu0 0
  %366 = vmatpush2.bf16.msra.mxu0 0
  %367 = vmatprep.subr.bf16.mxu0 0
  %368 = vmatpush2.bf16.msra.mxu0 0
  %369 = vmatprep.subr.bf16.mxu0 0
  %370 = vmatpush2.bf16.msra.mxu0 0
  %371 = vmatprep.subr.bf16.mxu0 0
  %372 = vmatpush2.bf16.msra.mxu0 0
  %373 = vmatprep.mubr.bf16.mxu0 0
  %374 = vmatmul.mubr.bf16.gmra.mxu0 %v340
  %v375 = vpop.f32.mrf.mxu0
  %v376 = vadd.f32 %v191, %v375
  %v377 = vpop.f32.mrf.mxu0
  %v378 = vpop.f32.mrf.mxu0
  %v379 = vadd.f32 %v191, %v378
  %v380 = vpop.f32.mrf.mxu0
  %381 = vdwg.mxu0
  %v382 = vmax.f32 %v376, 0.0
  %v383 = vmax.f32 %v379, 0.0
  %p384 = scmp.gt.s32.totalorder %s29, 2
  %s385 = scalar_select %p384, 1, 0
  %v386 = vstv %s385
  %vm387 = vcmp.eq.s32.totalorder %v386, 1
  %v388 = vsel %vm387, %v382, %v338
  %v389 = vsel %vm387, %v383, %v339
  %v390 = vpack.c.bf16 %v389, %v388
  %v392 = vlaneseq
  %v393 = vshrl.u32 %v392, 7
  %v394 = vsub.s32 0, %v393
  %v395 = vrot.slane %v80, %v394
  %v413 = vunpack.c.l.b16 %v62
  %v414 = vunpack.c.l.b16 %v63
  %v415 = vunpack.c.l.b16 %v64
  %v416 = vunpack.c.l.b16 %v65
  %v417 = vunpack.c.l.b16 %v66
  %v418 = vunpack.c.l.b16 %v67
  %v419 = vunpack.c.l.b16 %v68
  %v420 = vunpack.c.l.b16 %v69
  %v421 = vunpack.c.l.b16 %v70
  %v422 = vunpack.c.l.b16 %v71
  %v423 = vunpack.c.l.b16 %v72
  %v424 = vunpack.c.l.b16 %v73
  %v425 = vunpack.c.l.b16 %v74
  %v426 = vunpack.c.l.b16 %v75
  %v427 = vunpack.c.l.b16 %v76
  %v428 = vunpack.c.l.b16 %v77
  %v429 = vpack.c.b16 %v414, %v413
  %v430 = vpack.c.b16 %v416, %v415
  %v431 = vpack.c.b16 %v418, %v417
  %v432 = vpack.c.b16 %v420, %v419
  %v433 = vpack.c.b16 %v422, %v421
  %v434 = vpack.c.b16 %v424, %v423
  %v435 = vpack.c.b16 %v426, %v425
  %v436 = vpack.c.b16 %v428, %v427
  %445 = vmatprep.subr.bf16.mxu0 0
  %446 = vmatpush1.bf16.msra.mxu0 %v436
  %447 = vmatprep.subr.bf16.mxu0 0
  %448 = vmatpush1.bf16.msra.mxu0 %v435
  %449 = vmatprep.subr.bf16.mxu0 0
  %450 = vmatpush1.bf16.msra.mxu0 %v434
  %451 = vmatprep.subr.bf16.mxu0 0
  %452 = vmatpush1.bf16.msra.mxu0 %v433
  %453 = vmatprep.subr.bf16.mxu0 0
  %454 = vmatpush1.bf16.msra.mxu0 %v432
  %455 = vmatprep.subr.bf16.mxu0 0
  %456 = vmatpush1.bf16.msra.mxu0 %v431
  %457 = vmatprep.subr.bf16.mxu0 0
  %458 = vmatpush1.bf16.msra.mxu0 %v430
  %459 = vmatprep.subr.bf16.mxu0 0
  %460 = vmatpush1.bf16.msra.mxu0 %v429
  %461 = vmatprep.subr.bf16.mxu0 0
  %462 = vmatpush2.bf16.msra.mxu0 0
  %463 = vmatprep.subr.bf16.mxu0 0
  %464 = vmatpush2.bf16.msra.mxu0 0
  %465 = vmatprep.subr.bf16.mxu0 0
  %466 = vmatpush2.bf16.msra.mxu0 0
  %467 = vmatprep.subr.bf16.mxu0 0
  %468 = vmatpush2.bf16.msra.mxu0 0
  %469 = vmatprep.subr.bf16.mxu0 0
  %470 = vmatpush2.bf16.msra.mxu0 0
  %471 = vmatprep.subr.bf16.mxu0 0
  %472 = vmatpush2.bf16.msra.mxu0 0
  %473 = vmatprep.subr.bf16.mxu0 0
  %474 = vmatpush2.bf16.msra.mxu0 0
  %475 = vmatprep.subr.bf16.mxu0 0
  %476 = vmatpush2.bf16.msra.mxu0 0
  %477 = vmatprep.mubr.bf16.mxu0 0
  %478 = vmatmul.mubr.bf16.gmra.mxu0 %v390
  %v479 = vpop.f32.mrf.mxu0
  %v480 = vadd.f32 %v395, %v479
  %v481 = vpop.f32.mrf.mxu0
  %v482 = vpop.f32.mrf.mxu0
  %v483 = vadd.f32 %v395, %v482
  %v484 = vpop.f32.mrf.mxu0
  %485 = vdwg.mxu0
  %486 = vst [vmem:[%s8] sm:$0xff] %v480
  %487 = vst [vmem:[%s8 + $0x8] sm:$0xff] %v483
  // Predicated region
  $region30: #{dynamicnet_forward.1} parent=0 // pred_check
    _
  $region31: #{dynamicnet_forward.1} parent=0 // pred_check_branch
    %489 = sbr.rel (0) target = $region33
  $region32: #{dynamicnet_forward.1} parent=0 // pred_region
    _
  $region33: #{dynamicnet_forward.1} parent=0 // pred_fallthru
    _
  // Predicated region
  $region34: #{dynamicnet_forward.1} parent=0 // pred_check
    _
  $region35: #{dynamicnet_forward.1} parent=0 // pred_check_branch
    %491 = sbr.rel (0) target = $region37
  $region36: #{dynamicnet_forward.1} parent=0 // pred_region
    _
  $region37: #{dynamicnet_forward.1} parent=0 // pred_fallthru
    _

</llo_original>
